<compile_context>
chip_gen: v6e
topology: v6e:2x2x1
jax: 0.10.0
libtpu: 0.0.40
codegen_flags: <defaults>
</compile_context>

<pallas_src>
import jax
import jax.numpy as jnp
from jax.experimental import pallas as pl
from jax.experimental.pallas import tpu as pltpu

POOL = 4  # kernel_size=4; F.max_pool2d stride defaults to kernel_size


def _maxpool4x4_kernel(x_ref, o_ref):
    # x_ref: (Rt, 4*W)     row r packs the 4 consecutive image rows of one
    #                      vertical pooling group: [row0 | row1 | row2 | row3]
    # o_ref: (Rt//g, g*Wo) pooled rows; g pooling groups packed per lane-dense
    #                      output row (same flat element order as (Rt, Wo)).
    rt, w4 = x_ref.shape
    rg, gwo = o_ref.shape
    w = w4 // POOL
    wo = w // POOL
    g = rt // rg

    x = x_ref[...]
    # Vertical (H) max over the 4 packed image rows: contiguous lane slices,
    # pure elementwise maximum on the VPU.
    hm = jnp.maximum(
        jnp.maximum(x[:, 0 * w:1 * w], x[:, 1 * w:2 * w]),
        jnp.maximum(x[:, 2 * w:3 * w], x[:, 3 * w:4 * w]),
    )  # (Rt, W)
    # Horizontal (W) max over groups of 4 adjacent columns, emitted directly in
    # the grouped lane-dense output layout.
    pooled = jnp.max(hm.reshape(rg, g, wo, POOL), axis=-1)  # (Rt//g, g, Wo)
    o_ref[...] = pooled.reshape(rg, gwo).astype(o_ref.dtype)


def _divisors(x):
    ds = set()
    i = 1
    while i * i <= x:
        if x % i == 0:
            ds.add(i)
            ds.add(x // i)
        i += 1
    return sorted(ds)


def _pick_group(r_total, wo, max_g):
    """Group factor g: packs g pooled rows into one output row so the output
    array's last dim g*Wo is lane-dense. g must divide r_total (free reshape)."""
    cands = [d for d in _divisors(r_total) if d <= max(1, max_g)]
    mult128 = [d for d in cands if (d * wo) % 128 == 0]
    if mult128:
        return mult128[0]
    wide = [d for d in cands if d * wo >= 128]
    if wide:
        return wide[0]
    return cands[-1]  # best effort: widest legal grouping


def _plan(r_total, wo, row_bytes, sub, target_block_bytes):
    """Pick (row_tile, group) for the 1-D grid over pooling-group rows."""
    rows_budget = max(sub, target_block_bytes // max(1, row_bytes))
    if r_total <= rows_budget:
        # Whole problem in one block: every block dim equals the full array dim,
        # so no (8, 128) divisibility constraints apply.
        return r_total, _pick_group(r_total, wo, max_g=r_total)
    g = _pick_group(r_total, wo, max_g=rows_budget // sub)
    step = sub * g                       # keeps both in/out sublane dims legal
    rt = max(step, (rows_budget // step) * step)
    return rt, g


def _target_block_bytes():
    """Generation-aware input-block target (~6 MiB): double-buffered input +
    output blocks + reduction temporaries stay well inside the explicit
    32 MiB scoped-VMEM limit on v5e/v6e/v7x."""
    vmem_bytes = 128 << 20
    try:  # trace-time hardware query; fall back if unavailable
        vmem_bytes = int(pltpu.get_tpu_info().vmem_capacity_bytes)
    except Exception:
        pass
    return max(2 << 20, min(6 << 20, vmem_bytes // 10))


def pool_reducing_layer(vision, *, target_block_bytes=None):
    """Pallas TPU implementation of PoolReducingLayer.forward:
       F.max_pool2d(vision, kernel_size=4).view(batch, -1)."""
    n, c, h, w = vision.shape
    ho, wo = h // POOL, w // POOL
    if h % POOL or w % POOL:
        # F.max_pool2d floors: drop trailing rows/cols before the free view.
        vision = vision[:, :, :ho * POOL, :wo * POOL]
    wcrop = wo * POOL
    w4 = POOL * wcrop                    # 4 packed image rows per group
    r_total = n * c * ho                 # total vertical pooling groups

    itemsize = jnp.dtype(vision.dtype).itemsize
    sub = 8 * max(1, 4 // itemsize)      # sublane packing: 8 f32 / 16 bf16 / 32 i8
    row_bytes = w4 * itemsize
    if target_block_bytes is None:
        target_block_bytes = _target_block_bytes()
    rt, g = _plan(r_total, wo, row_bytes, sub, target_block_bytes)

    # Free view of contiguous dims (no HBM copy): collapse batch/channel/row-group.
    x_rows = vision.reshape(r_total, w4)

    out = pl.pallas_call(
        _maxpool4x4_kernel,
        out_shape=jax.ShapeDtypeStruct((r_total // g, g * wo), vision.dtype),
        grid=(pl.cdiv(r_total, rt),),    # ragged edge OK: rows are independent
        in_specs=[pl.BlockSpec((rt, w4), lambda j: (j, 0))],
        out_specs=pl.BlockSpec((rt // g, g * wo), lambda j: (j, 0)),
        compiler_params=pltpu.CompilerParams(
            dimension_semantics=("parallel",),
            vmem_limit_bytes=32 << 20,
        ),
        cost_estimate=pl.CostEstimate(
            flops=int(r_total) * wcrop * POOL,          # ~1 compare / input elem
            transcendentals=0,
            bytes_accessed=int(r_total) * (w4 + wo) * itemsize,
        ),
    )(x_rows)

    # Free reshape of the same flat buffer -> NCHW flatten order, as in PyTorch.
    return out.reshape(n, c * ho * wo)


if __name__ == "__main__":
    key = jax.random.PRNGKey(0)

    def reference(x):
        nn, cc, hh, ww = x.shape
        hc, wc = (hh // POOL) * POOL, (ww // POOL) * POOL
        p = jnp.max(
            x[:, :, :hc, :wc].reshape(nn, cc, hc // POOL, POOL, wc // POOL, POOL),
            axis=(3, 5))
        return p.reshape(nn, -1)

    k1, k2 = jax.random.split(key)

    # Test 1: the module's nominal small shape (single-block, lane-dense path).
    x1 = jax.random.normal(k1, (2, 4, 16, 16), dtype=jnp.float32)
    y1 = jax.block_until_ready(pool_reducing_layer(x1))
    assert y1.shape == (2, 4 * 4 * 4), y1.shape
    assert jnp.array_equal(y1, reference(x1)), "mismatch vs reference (test 1)"

    # Test 2: force the multi-block / ragged-edge path with a tiny block budget.
    x2 = jax.random.normal(k2, (1, 3, 40, 32), dtype=jnp.float32)
    y2 = jax.block_until_ready(pool_reducing_layer(x2, target_block_bytes=4096))
    assert y2.shape == (1, 3 * 10 * 8), y2.shape
    assert jnp.array_equal(y2, reference(x2)), "mismatch vs reference (test 2)"

    print("KERNEL_OK")
</pallas_src>

<mosaic_0001>
module attributes {stable_mosaic.version = 11 : i64} {
  func.func @_maxpool4x4_kernel(%arg0: i32, %arg1: memref<32x64xf32, #tpu.memory_space<vmem>>, %arg2: memref<1x128xf32, #tpu.memory_space<vmem>>) attributes {dimension_semantics = [#tpu.dimension_semantics<parallel>], iteration_bounds = array<i64: 1>, scalar_prefetch = 0 : i64, scratch_operands = 0 : i64, tpu.core_type = #tpu.core_type<tc>, window_params = [{transform_indices = @transform_0, window_bounds = array<i64: 32, 64>}, {transform_indices = @transform_1, window_bounds = array<i64: 1, 128>}]} {
    %c0 = arith.constant 0 : index
    %c0_0 = arith.constant 0 : index
    %0 = vector.load %arg1[%c0, %c0_0] : memref<32x64xf32, #tpu.memory_space<vmem>>, vector<32x64xf32>
    %1 = vector.extract_strided_slice %0 {offsets = [0, 0], sizes = [32, 16], strides = [1, 1]} : vector<32x64xf32> to vector<32x16xf32>
    %2 = vector.extract_strided_slice %0 {offsets = [0, 16], sizes = [32, 16], strides = [1, 1]} : vector<32x64xf32> to vector<32x16xf32>
    %3 = arith.maximumf %1, %2 : vector<32x16xf32>
    %4 = vector.extract_strided_slice %0 {offsets = [0, 32], sizes = [32, 16], strides = [1, 1]} : vector<32x64xf32> to vector<32x16xf32>
    %5 = vector.extract_strided_slice %0 {offsets = [0, 48], sizes = [32, 16], strides = [1, 1]} : vector<32x64xf32> to vector<32x16xf32>
    %6 = arith.maximumf %4, %5 : vector<32x16xf32>
    %7 = arith.maximumf %3, %6 : vector<32x16xf32>
    %8 = vector.shape_cast %7 : vector<32x16xf32> to vector<1x32x4x4xf32>
    %cst = arith.constant dense<0xFF800000> : vector<1x32x4xf32>
    %9 = vector.multi_reduction <maximumf>, %8, %cst [3] : vector<1x32x4x4xf32> to vector<1x32x4xf32>
    %10 = vector.shape_cast %9 : vector<1x32x4xf32> to vector<1x128xf32>
    %c0_1 = arith.constant 0 : index
    %c0_2 = arith.constant 0 : index
    %11 = vector.load %arg2[%c0_1, %c0_2] : memref<1x128xf32, #tpu.memory_space<vmem>>, vector<1x128xf32>
    tpu.vector_store %arg2[%c0_1, %c0_2], %10 {strides = array<i32>} : memref<1x128xf32, #tpu.memory_space<vmem>>, vector<1x128xf32>,
    return
  }
  func.func @transform_0(%arg0: i32) -> (i32, i32) {
    %c0_i32 = arith.constant 0 : i32
    %c0_i32_0 = arith.constant 0 : i32
    return %arg0, %c0_i32 : i32, i32
  }
  func.func @transform_1(%arg0: i32) -> (i32, i32) {
    %c0_i32 = arith.constant 0 : i32
    %c0_i32_0 = arith.constant 0 : i32
    return %arg0, %c0_i32 : i32, i32
  }
}

</mosaic_0001>

<llo_original>
// kernel: tpu_custom_call.1
$region0: #{tpu_custom_call.1}
  #allocation0 [shape = 'u32[]', space=smem, size = 0x4, offset = 0x4, fixed_abs, tag = 'smem constant byte address 0x4 - core index']
  #allocation1 [shape = 'u32[144,128]{1,0:T(1,128)}', space=vmem, size = 0x12000, scoped, tag = 'internal scratch']
  %s0 = inlined_call_operand.hbm [shape: f32[32,64], index: 0, kind: input, shape index: {}]
  %s1 = inlined_call_operand.hbm [shape: f32[1,128], index: 1, kind: output, shape index: {}]
  %s2 = sld [smem:[#allocation0]]
  $region18: #{tpu_custom_call.1} parent=0
    _
  %s4 = ssub.s32 1, %s2
  %s5 = scalar_select 0, %s4, %s2
  $region1: #{tpu_custom_call.1} parent=0
    #allocation2 [shape = 'u8[16384]{0}', space=vmem, size = 0x4000, scoped, tag = 'input window, operand 0, single buffered']
    #allocation3 [shape = 's32[1]{0}', space=sflag, size = 0x4, scoped, tag = 'scoped memory for tpu_custom_call.1']
    #allocation4 [shape = 's32[1]{0}', space=sflag, size = 0x4, scoped, tag = 'scoped memory for tpu_custom_call.1']
    #allocation5 [shape = 'u8[512]{0}', space=vmem, size = 0x400, scoped, tag = 'output window, operand 0, single buffered']
    %6 = vsyncpa [#allocation3], 0
    %7 = vsyncpa [#allocation4], 0
    // Predicated region
    $region2: #{tpu_custom_call.1} parent=1 // pred_check
      _
    $region3: #{tpu_custom_call.1} parent=1 // pred_check_branch
      %9 = sbr.rel (0) target = $region5
    $region4: #{tpu_custom_call.1} parent=1 // pred_region
      %s11 = ssub.s32 512, 512
      %12 = vsyncadd [#allocation3], %s11
      %s13 = sshll.u32 [#allocation2], 4
      %s14 = int_to_ptr.vmem [resolvable:$true] %s13
      %19 = dma.hbm_to_vmem [thread:$0]  %s0, 512, %s14, [#allocation3], 128, 128, 8
    $region5: #{tpu_custom_call.1} parent=1 // pred_fallthru
      _
    // Predicated region
    $region6: #{tpu_custom_call.1} parent=1 // pred_check
      _
    $region7: #{tpu_custom_call.1} parent=1 // pred_check_branch
      %21 = sbr.rel (0) target = $region9
    $region8: #{tpu_custom_call.1} parent=1 // pred_region
      %22 = dma.done [#allocation3], 512
    $region9: #{tpu_custom_call.1} parent=1 // pred_fallthru
      _
    %v23 = vld [vmem:[#allocation2] sm:$0xff]
    %v24 = vld [vmem:[#allocation2 + $0x8] sm:$0xff]
    %v25 = vld [vmem:[#allocation2 + $0x10] sm:$0xff]
    %v26 = vld [vmem:[#allocation2 + $0x18] sm:$0xff]
    %31 = vrot.lane.b32.xlu0 %v23, 112
    %v32 = vpop.permute.xlu0 %31
    %33 = vrot.lane.b32.xlu0 %v24, 112
    %v34 = vpop.permute.xlu0 %33
    %35 = vrot.lane.b32.xlu0 %v25, 112
    %v36 = vpop.permute.xlu0 %35
    %37 = vrot.lane.b32.xlu0 %v26, 112
    %v38 = vpop.permute.xlu0 %37
    %v43 = vmax.f32 %v23, %v32
    %v44 = vmax.f32 %v24, %v34
    %v45 = vmax.f32 %v25, %v36
    %v46 = vmax.f32 %v26, %v38
    %51 = vrot.lane.b32.xlu0 %v43, 96
    %v52 = vpop.permute.xlu0 %51
    %53 = vrot.lane.b32.xlu0 %v44, 96
    %v54 = vpop.permute.xlu0 %53
    %55 = vrot.lane.b32.xlu0 %v45, 96
    %v56 = vpop.permute.xlu0 %55
    %57 = vrot.lane.b32.xlu0 %v46, 96
    %v58 = vpop.permute.xlu0 %57
    %v63 = vmax.f32 %v43, %v52
    %v64 = vmax.f32 %v44, %v54
    %v65 = vmax.f32 %v45, %v56
    %v66 = vmax.f32 %v46, %v58
    %71 = vrot.lane.b32.xlu0 %v63, 124
    %v72 = vpop.permute.xlu0 %71
    %73 = vrot.lane.b32.xlu0 %v64, 124
    %v74 = vpop.permute.xlu0 %73
    %75 = vrot.lane.b32.xlu0 %v65, 124
    %v76 = vpop.permute.xlu0 %75
    %77 = vrot.lane.b32.xlu0 %v66, 124
    %v78 = vpop.permute.xlu0 %77
    %83 = vrot.lane.b32.xlu0 %v63, 120
    %v84 = vpop.permute.xlu0 %83
    %85 = vrot.lane.b32.xlu0 %v64, 120
    %v86 = vpop.permute.xlu0 %85
    %87 = vrot.lane.b32.xlu0 %v65, 120
    %v88 = vpop.permute.xlu0 %87
    %89 = vrot.lane.b32.xlu0 %v66, 120
    %v90 = vpop.permute.xlu0 %89
    %95 = vrot.lane.b32.xlu0 %v63, 116
    %v96 = vpop.permute.xlu0 %95
    %97 = vrot.lane.b32.xlu0 %v64, 116
    %v98 = vpop.permute.xlu0 %97
    %99 = vrot.lane.b32.xlu0 %v65, 116
    %v100 = vpop.permute.xlu0 %99
    %101 = vrot.lane.b32.xlu0 %v66, 116
    %v102 = vpop.permute.xlu0 %101
    %v107 = vcombine.low %v63, %v84
    %v108 = vcombine.high %v63, %v84
    %v110 = vunpack.c.l.s4 1983009808
    %v111 = vunpack.c.0.s8 %v110
    %v112 = vlaneseq
    %v113 = vshrl.u32 %v112, 7
    %v114 = vsub.s32 %v111, %v113
    %v115 = vrot.slane %v107, %v114
    %v117 = vunpack.c.l.s4 1983009808
    %v118 = vunpack.c.0.s8 %v117
    %v119 = vlaneseq
    %v120 = vshrl.u32 %v119, 7
    %v121 = vsub.s32 %v118, %v120
    %v122 = vrot.slane %v108, %v121
    %v123 = vcombine.low %v72, %v96
    %v124 = vcombine.high %v72, %v96
    %v126 = vunpack.c.l.s4 1983009808
    %v127 = vunpack.c.0.s8 %v126
    %v128 = vlaneseq
    %v129 = vshrl.u32 %v128, 7
    %v130 = vsub.s32 %v127, %v129
    %v131 = vrot.slane %v123, %v130
    %v133 = vunpack.c.l.s4 1983009808
    %v134 = vunpack.c.0.s8 %v133
    %v135 = vlaneseq
    %v136 = vshrl.u32 %v135, 7
    %v137 = vsub.s32 %v134, %v136
    %v138 = vrot.slane %v124, %v137
    %v139 = vcombine.low %v115, %v131
    %v140 = vcombine.high %v115, %v131
    %v142 = vunpack.c.l.s4 1934713408
    %v143 = vunpack.c.0.s8 %v142
    %v144 = vlaneseq
    %v145 = vshrl.u32 %v144, 7
    %v146 = vsub.s32 %v143, %v145
    %v147 = vrot.slane %v139, %v146
    %v149 = vunpack.c.l.s4 1934713408
    %v150 = vunpack.c.0.s8 %v149
    %v151 = vlaneseq
    %v152 = vshrl.u32 %v151, 7
    %v153 = vsub.s32 %v150, %v152
    %v154 = vrot.slane %v140, %v153
    %v155 = vcombine.low %v122, %v138
    %v156 = vcombine.high %v122, %v138
    %v158 = vunpack.c.l.s4 1934713408
    %v159 = vunpack.c.0.s8 %v158
    %v160 = vlaneseq
    %v161 = vshrl.u32 %v160, 7
    %v162 = vsub.s32 %v159, %v161
    %v163 = vrot.slane %v155, %v162
    %v165 = vunpack.c.l.s4 1934713408
    %v166 = vunpack.c.0.s8 %v165
    %v167 = vlaneseq
    %v168 = vshrl.u32 %v167, 7
    %v169 = vsub.s32 %v166, %v168
    %v170 = vrot.slane %v156, %v169
    %v171 = vcombine.high %v147, 0.0
    %v172 = vcombine.high %v154, 0.0
    %v173 = vcombine.high %v163, 0.0
    %v174 = vcombine.high %v170, 0.0
    %v175 = vcombine.low %v64, %v86
    %v176 = vcombine.high %v64, %v86
    %v178 = vunpack.c.l.s4 1983009808
    %v179 = vunpack.c.0.s8 %v178
    %v180 = vlaneseq
    %v181 = vshrl.u32 %v180, 7
    %v182 = vsub.s32 %v179, %v181
    %v183 = vrot.slane %v175, %v182
    %v185 = vunpack.c.l.s4 1983009808
    %v186 = vunpack.c.0.s8 %v185
    %v187 = vlaneseq
    %v188 = vshrl.u32 %v187, 7
    %v189 = vsub.s32 %v186, %v188
    %v190 = vrot.slane %v176, %v189
    %v191 = vcombine.low %v74, %v98
    %v192 = vcombine.high %v74, %v98
    %v194 = vunpack.c.l.s4 1983009808
    %v195 = vunpack.c.0.s8 %v194
    %v196 = vlaneseq
    %v197 = vshrl.u32 %v196, 7
    %v198 = vsub.s32 %v195, %v197
    %v199 = vrot.slane %v191, %v198
    %v201 = vunpack.c.l.s4 1983009808
    %v202 = vunpack.c.0.s8 %v201
    %v203 = vlaneseq
    %v204 = vshrl.u32 %v203, 7
    %v205 = vsub.s32 %v202, %v204
    %v206 = vrot.slane %v192, %v205
    %v207 = vcombine.low %v183, %v199
    %v208 = vcombine.high %v183, %v199
    %v210 = vunpack.c.l.s4 1934713408
    %v211 = vunpack.c.0.s8 %v210
    %v212 = vlaneseq
    %v213 = vshrl.u32 %v212, 7
    %v214 = vsub.s32 %v211, %v213
    %v215 = vrot.slane %v207, %v214
    %v217 = vunpack.c.l.s4 1934713408
    %v218 = vunpack.c.0.s8 %v217
    %v219 = vlaneseq
    %v220 = vshrl.u32 %v219, 7
    %v221 = vsub.s32 %v218, %v220
    %v222 = vrot.slane %v208, %v221
    %v223 = vcombine.low %v190, %v206
    %v224 = vcombine.high %v190, %v206
    %v226 = vunpack.c.l.s4 1934713408
    %v227 = vunpack.c.0.s8 %v226
    %v228 = vlaneseq
    %v229 = vshrl.u32 %v228, 7
    %v230 = vsub.s32 %v227, %v229
    %v231 = vrot.slane %v223, %v230
    %v233 = vunpack.c.l.s4 1934713408
    %v234 = vunpack.c.0.s8 %v233
    %v235 = vlaneseq
    %v236 = vshrl.u32 %v235, 7
    %v237 = vsub.s32 %v234, %v236
    %v238 = vrot.slane %v224, %v237
    %v239 = vcombine.high %v215, 0.0
    %v240 = vcombine.high %v222, 0.0
    %v241 = vcombine.high %v231, 0.0
    %v242 = vcombine.high %v238, 0.0
    %v243 = vcombine.low %v65, %v88
    %v244 = vcombine.high %v65, %v88
    %v246 = vunpack.c.l.s4 1983009808
    %v247 = vunpack.c.0.s8 %v246
    %v248 = vlaneseq
    %v249 = vshrl.u32 %v248, 7
    %v250 = vsub.s32 %v247, %v249
    %v251 = vrot.slane %v243, %v250
    %v253 = vunpack.c.l.s4 1983009808
    %v254 = vunpack.c.0.s8 %v253
    %v255 = vlaneseq
    %v256 = vshrl.u32 %v255, 7
    %v257 = vsub.s32 %v254, %v256
    %v258 = vrot.slane %v244, %v257
    %v259 = vcombine.low %v76, %v100
    %v260 = vcombine.high %v76, %v100
    %v262 = vunpack.c.l.s4 1983009808
    %v263 = vunpack.c.0.s8 %v262
    %v264 = vlaneseq
    %v265 = vshrl.u32 %v264, 7
    %v266 = vsub.s32 %v263, %v265
    %v267 = vrot.slane %v259, %v266
    %v269 = vunpack.c.l.s4 1983009808
    %v270 = vunpack.c.0.s8 %v269
    %v271 = vlaneseq
    %v272 = vshrl.u32 %v271, 7
    %v273 = vsub.s32 %v270, %v272
    %v274 = vrot.slane %v260, %v273
    %v275 = vcombine.low %v251, %v267
    %v276 = vcombine.high %v251, %v267
    %v278 = vunpack.c.l.s4 1934713408
    %v279 = vunpack.c.0.s8 %v278
    %v280 = vlaneseq
    %v281 = vshrl.u32 %v280, 7
    %v282 = vsub.s32 %v279, %v281
    %v283 = vrot.slane %v275, %v282
    %v285 = vunpack.c.l.s4 1934713408
    %v286 = vunpack.c.0.s8 %v285
    %v287 = vlaneseq
    %v288 = vshrl.u32 %v287, 7
    %v289 = vsub.s32 %v286, %v288
    %v290 = vrot.slane %v276, %v289
    %v291 = vcombine.low %v258, %v274
    %v292 = vcombine.high %v258, %v274
    %v294 = vunpack.c.l.s4 1934713408
    %v295 = vunpack.c.0.s8 %v294
    %v296 = vlaneseq
    %v297 = vshrl.u32 %v296, 7
    %v298 = vsub.s32 %v295, %v297
    %v299 = vrot.slane %v291, %v298
    %v301 = vunpack.c.l.s4 1934713408
    %v302 = vunpack.c.0.s8 %v301
    %v303 = vlaneseq
    %v304 = vshrl.u32 %v303, 7
    %v305 = vsub.s32 %v302, %v304
    %v306 = vrot.slane %v292, %v305
    %v307 = vcombine.high %v283, 0.0
    %v308 = vcombine.high %v290, 0.0
    %v309 = vcombine.high %v299, 0.0
    %v310 = vcombine.high %v306, 0.0
    %v311 = vcombine.low %v66, %v90
    %v312 = vcombine.high %v66, %v90
    %v314 = vunpack.c.l.s4 1983009808
    %v315 = vunpack.c.0.s8 %v314
    %v316 = vlaneseq
    %v317 = vshrl.u32 %v316, 7
    %v318 = vsub.s32 %v315, %v317
    %v319 = vrot.slane %v311, %v318
    %v321 = vunpack.c.l.s4 1983009808
    %v322 = vunpack.c.0.s8 %v321
    %v323 = vlaneseq
    %v324 = vshrl.u32 %v323, 7
    %v325 = vsub.s32 %v322, %v324
    %v326 = vrot.slane %v312, %v325
    %v327 = vcombine.low %v78, %v102
    %v328 = vcombine.high %v78, %v102
    %v330 = vunpack.c.l.s4 1983009808
    %v331 = vunpack.c.0.s8 %v330
    %v332 = vlaneseq
    %v333 = vshrl.u32 %v332, 7
    %v334 = vsub.s32 %v331, %v333
    %v335 = vrot.slane %v327, %v334
    %v337 = vunpack.c.l.s4 1983009808
    %v338 = vunpack.c.0.s8 %v337
    %v339 = vlaneseq
    %v340 = vshrl.u32 %v339, 7
    %v341 = vsub.s32 %v338, %v340
    %v342 = vrot.slane %v328, %v341
    %v343 = vcombine.low %v319, %v335
    %v344 = vcombine.high %v319, %v335
    %v346 = vunpack.c.l.s4 1934713408
    %v347 = vunpack.c.0.s8 %v346
    %v348 = vlaneseq
    %v349 = vshrl.u32 %v348, 7
    %v350 = vsub.s32 %v347, %v349
    %v351 = vrot.slane %v343, %v350
    %v353 = vunpack.c.l.s4 1934713408
    %v354 = vunpack.c.0.s8 %v353
    %v355 = vlaneseq
    %v356 = vshrl.u32 %v355, 7
    %v357 = vsub.s32 %v354, %v356
    %v358 = vrot.slane %v344, %v357
    %v359 = vcombine.low %v326, %v342
    %v360 = vcombine.high %v326, %v342
    %v362 = vunpack.c.l.s4 1934713408
    %v363 = vunpack.c.0.s8 %v362
    %v364 = vlaneseq
    %v365 = vshrl.u32 %v364, 7
    %v366 = vsub.s32 %v363, %v365
    %v367 = vrot.slane %v359, %v366
    %v369 = vunpack.c.l.s4 1934713408
    %v370 = vunpack.c.0.s8 %v369
    %v371 = vlaneseq
    %v372 = vshrl.u32 %v371, 7
    %v373 = vsub.s32 %v370, %v372
    %v374 = vrot.slane %v360, %v373
    %v375 = vcombine.high %v351, 0.0
    %v376 = vcombine.high %v358, 0.0
    %v377 = vcombine.high %v367, 0.0
    %v378 = vcombine.high %v374, 0.0
    %vm379 = vcmask 27648
    %v380 = vsel %vm379, %v147, -inf
    %381 = vmax.xlane.f32.xlu0 %v380
    %v382 = vpop.xlane.xlu0 %381
    %v383 = vsel %vm379, %v171, -inf
    %384 = vmax.xlane.f32.xlu0 %v383
    %v385 = vpop.xlane.xlu0 %384
    %v386 = vsel %vm379, %v154, -inf
    %387 = vmax.xlane.f32.xlu0 %v386
    %v388 = vpop.xlane.xlu0 %387
    %v389 = vsel %vm379, %v172, -inf
    %390 = vmax.xlane.f32.xlu0 %v389
    %v391 = vpop.xlane.xlu0 %390
    %v392 = vsel %vm379, %v163, -inf
    %393 = vmax.xlane.f32.xlu0 %v392
    %v394 = vpop.xlane.xlu0 %393
    %v395 = vsel %vm379, %v173, -inf
    %396 = vmax.xlane.f32.xlu0 %v395
    %v397 = vpop.xlane.xlu0 %396
    %v398 = vsel %vm379, %v170, -inf
    %399 = vmax.xlane.f32.xlu0 %v398
    %v400 = vpop.xlane.xlu0 %399
    %v401 = vsel %vm379, %v174, -inf
    %402 = vmax.xlane.f32.xlu0 %v401
    %v403 = vpop.xlane.xlu0 %402
    %v404 = vsel %vm379, %v215, -inf
    %405 = vmax.xlane.f32.xlu0 %v404
    %v406 = vpop.xlane.xlu0 %405
    %v407 = vsel %vm379, %v239, -inf
    %408 = vmax.xlane.f32.xlu0 %v407
    %v409 = vpop.xlane.xlu0 %408
    %v410 = vsel %vm379, %v222, -inf
    %411 = vmax.xlane.f32.xlu0 %v410
    %v412 = vpop.xlane.xlu0 %411
    %v413 = vsel %vm379, %v240, -inf
    %414 = vmax.xlane.f32.xlu0 %v413
    %v415 = vpop.xlane.xlu0 %414
    %v416 = vsel %vm379, %v231, -inf
    %417 = vmax.xlane.f32.xlu0 %v416
    %v418 = vpop.xlane.xlu0 %417
    %v419 = vsel %vm379, %v241, -inf
    %420 = vmax.xlane.f32.xlu0 %v419
    %v421 = vpop.xlane.xlu0 %420
    %v422 = vsel %vm379, %v238, -inf
    %423 = vmax.xlane.f32.xlu0 %v422
    %v424 = vpop.xlane.xlu0 %423
    %v425 = vsel %vm379, %v242, -inf
    %426 = vmax.xlane.f32.xlu0 %v425
    %v427 = vpop.xlane.xlu0 %426
    %v428 = vsel %vm379, %v283, -inf
    %429 = vmax.xlane.f32.xlu0 %v428
    %v430 = vpop.xlane.xlu0 %429
    %v431 = vsel %vm379, %v307, -inf
    %432 = vmax.xlane.f32.xlu0 %v431
    %v433 = vpop.xlane.xlu0 %432
    %v434 = vsel %vm379, %v290, -inf
    %435 = vmax.xlane.f32.xlu0 %v434
    %v436 = vpop.xlane.xlu0 %435
    %v437 = vsel %vm379, %v308, -inf
    %438 = vmax.xlane.f32.xlu0 %v437
    %v439 = vpop.xlane.xlu0 %438
    %v440 = vsel %vm379, %v299, -inf
    %441 = vmax.xlane.f32.xlu0 %v440
    %v442 = vpop.xlane.xlu0 %441
    %v443 = vsel %vm379, %v309, -inf
    %444 = vmax.xlane.f32.xlu0 %v443
    %v445 = vpop.xlane.xlu0 %444
    %v446 = vsel %vm379, %v306, -inf
    %447 = vmax.xlane.f32.xlu0 %v446
    %v448 = vpop.xlane.xlu0 %447
    %v449 = vsel %vm379, %v310, -inf
    %450 = vmax.xlane.f32.xlu0 %v449
    %v451 = vpop.xlane.xlu0 %450
    %v452 = vsel %vm379, %v351, -inf
    %453 = vmax.xlane.f32.xlu0 %v452
    %v454 = vpop.xlane.xlu0 %453
    %v455 = vsel %vm379, %v375, -inf
    %456 = vmax.xlane.f32.xlu0 %v455
    %v457 = vpop.xlane.xlu0 %456
    %v458 = vsel %vm379, %v358, -inf
    %459 = vmax.xlane.f32.xlu0 %v458
    %v460 = vpop.xlane.xlu0 %459
    %v461 = vsel %vm379, %v376, -inf
    %462 = vmax.xlane.f32.xlu0 %v461
    %v463 = vpop.xlane.xlu0 %462
    %v464 = vsel %vm379, %v367, -inf
    %465 = vmax.xlane.f32.xlu0 %v464
    %v466 = vpop.xlane.xlu0 %465
    %v467 = vsel %vm379, %v377, -inf
    %468 = vmax.xlane.f32.xlu0 %v467
    %v469 = vpop.xlane.xlu0 %468
    %v470 = vsel %vm379, %v374, -inf
    %471 = vmax.xlane.f32.xlu0 %v470
    %v472 = vpop.xlane.xlu0 %471
    %v473 = vsel %vm379, %v378, -inf
    %474 = vmax.xlane.f32.xlu0 %v473
    %v475 = vpop.xlane.xlu0 %474
    %v508 = vlaneseq
    %v509 = vand.u32 %v508, 127
    %v510 = vlaneseq
    %v511 = vshrl.u32 %v510, 7
    %v512 = vsub.s32 %v509, %v511
    %v513 = vrot.slane %v382, %v512
    %v514 = vlaneseq
    %v515 = vshrl.u32 %v514, 7
    %v516 = vsub.s32 %v509, %v515
    %v517 = vrot.slane %v385, %v516
    %v518 = vlaneseq
    %v519 = vshrl.u32 %v518, 7
    %v520 = vsub.s32 %v509, %v519
    %v521 = vrot.slane %v388, %v520
    %v522 = vlaneseq
    %v523 = vshrl.u32 %v522, 7
    %v524 = vsub.s32 %v509, %v523
    %v525 = vrot.slane %v391, %v524
    %v526 = vlaneseq
    %v527 = vshrl.u32 %v526, 7
    %v528 = vsub.s32 %v509, %v527
    %v529 = vrot.slane %v394, %v528
    %v530 = vlaneseq
    %v531 = vshrl.u32 %v530, 7
    %v532 = vsub.s32 %v509, %v531
    %v533 = vrot.slane %v397, %v532
    %v534 = vlaneseq
    %v535 = vshrl.u32 %v534, 7
    %v536 = vsub.s32 %v509, %v535
    %v537 = vrot.slane %v400, %v536
    %v538 = vlaneseq
    %v539 = vshrl.u32 %v538, 7
    %v540 = vsub.s32 %v509, %v539
    %v541 = vrot.slane %v403, %v540
    %v542 = vlaneseq
    %v543 = vshrl.u32 %v542, 7
    %v544 = vsub.s32 %v509, %v543
    %v545 = vrot.slane %v406, %v544
    %v546 = vlaneseq
    %v547 = vshrl.u32 %v546, 7
    %v548 = vsub.s32 %v509, %v547
    %v549 = vrot.slane %v409, %v548
    %v550 = vlaneseq
    %v551 = vshrl.u32 %v550, 7
    %v552 = vsub.s32 %v509, %v551
    %v553 = vrot.slane %v412, %v552
    %v554 = vlaneseq
    %v555 = vshrl.u32 %v554, 7
    %v556 = vsub.s32 %v509, %v555
    %v557 = vrot.slane %v415, %v556
    %v558 = vlaneseq
    %v559 = vshrl.u32 %v558, 7
    %v560 = vsub.s32 %v509, %v559
    %v561 = vrot.slane %v418, %v560
    %v562 = vlaneseq
    %v563 = vshrl.u32 %v562, 7
    %v564 = vsub.s32 %v509, %v563
    %v565 = vrot.slane %v421, %v564
    %v566 = vlaneseq
    %v567 = vshrl.u32 %v566, 7
    %v568 = vsub.s32 %v509, %v567
    %v569 = vrot.slane %v424, %v568
    %v570 = vlaneseq
    %v571 = vshrl.u32 %v570, 7
    %v572 = vsub.s32 %v509, %v571
    %v573 = vrot.slane %v427, %v572
    %v574 = vlaneseq
    %v575 = vshrl.u32 %v574, 7
    %v576 = vsub.s32 %v509, %v575
    %v577 = vrot.slane %v430, %v576
    %v578 = vlaneseq
    %v579 = vshrl.u32 %v578, 7
    %v580 = vsub.s32 %v509, %v579
    %v581 = vrot.slane %v433, %v580
    %v582 = vlaneseq
    %v583 = vshrl.u32 %v582, 7
    %v584 = vsub.s32 %v509, %v583
    %v585 = vrot.slane %v436, %v584
    %v586 = vlaneseq
    %v587 = vshrl.u32 %v586, 7
    %v588 = vsub.s32 %v509, %v587
    %v589 = vrot.slane %v439, %v588
    %v590 = vlaneseq
    %v591 = vshrl.u32 %v590, 7
    %v592 = vsub.s32 %v509, %v591
    %v593 = vrot.slane %v442, %v592
    %v594 = vlaneseq
    %v595 = vshrl.u32 %v594, 7
    %v596 = vsub.s32 %v509, %v595
    %v597 = vrot.slane %v445, %v596
    %v598 = vlaneseq
    %v599 = vshrl.u32 %v598, 7
    %v600 = vsub.s32 %v509, %v599
    %v601 = vrot.slane %v448, %v600
    %v602 = vlaneseq
    %v603 = vshrl.u32 %v602, 7
    %v604 = vsub.s32 %v509, %v603
    %v605 = vrot.slane %v451, %v604
    %v606 = vlaneseq
    %v607 = vshrl.u32 %v606, 7
    %v608 = vsub.s32 %v509, %v607
    %v609 = vrot.slane %v454, %v608
    %v610 = vlaneseq
    %v611 = vshrl.u32 %v610, 7
    %v612 = vsub.s32 %v509, %v611
    %v613 = vrot.slane %v457, %v612
    %v614 = vlaneseq
    %v615 = vshrl.u32 %v614, 7
    %v616 = vsub.s32 %v509, %v615
    %v617 = vrot.slane %v460, %v616
    %v618 = vlaneseq
    %v619 = vshrl.u32 %v618, 7
    %v620 = vsub.s32 %v509, %v619
    %v621 = vrot.slane %v463, %v620
    %v622 = vlaneseq
    %v623 = vshrl.u32 %v622, 7
    %v624 = vsub.s32 %v509, %v623
    %v625 = vrot.slane %v466, %v624
    %v626 = vlaneseq
    %v627 = vshrl.u32 %v626, 7
    %v628 = vsub.s32 %v509, %v627
    %v629 = vrot.slane %v469, %v628
    %v630 = vlaneseq
    %v631 = vshrl.u32 %v630, 7
    %v632 = vsub.s32 %v509, %v631
    %v633 = vrot.slane %v472, %v632
    %v634 = vlaneseq
    %v635 = vshrl.u32 %v634, 7
    %v636 = vsub.s32 %v509, %v635
    %v637 = vrot.slane %v475, %v636
    %vm638 = vcmask 1041409
    %v639 = vsel %vm638, %v517, %v513
    %vm640 = vcmask 1042434
    %v641 = vsel %vm640, %v521, %v639
    %vm642 = vcmask 1043459
    %v643 = vsel %vm642, %v525, %v641
    %vm644 = vcmask 1044484
    %v645 = vsel %vm644, %v529, %v643
    %vm646 = vcmask 1045509
    %v647 = vsel %vm646, %v533, %v645
    %vm648 = vcmask 1046534
    %v649 = vsel %vm648, %v537, %v647
    %vm650 = vcmask 1047559
    %v651 = vsel %vm650, %v541, %v649
    %v652 = vsel %vm638, %v549, %v545
    %v653 = vsel %vm640, %v553, %v652
    %v654 = vsel %vm642, %v557, %v653
    %v655 = vsel %vm644, %v561, %v654
    %v656 = vsel %vm646, %v565, %v655
    %v657 = vsel %vm648, %v569, %v656
    %v658 = vsel %vm650, %v573, %v657
    %v659 = vsel %vm638, %v581, %v577
    %v660 = vsel %vm640, %v585, %v659
    %v661 = vsel %vm642, %v589, %v660
    %v662 = vsel %vm644, %v593, %v661
    %v663 = vsel %vm646, %v597, %v662
    %v664 = vsel %vm648, %v601, %v663
    %v665 = vsel %vm650, %v605, %v664
    %v666 = vsel %vm638, %v613, %v609
    %v667 = vsel %vm640, %v617, %v666
    %v668 = vsel %vm642, %v621, %v667
    %v669 = vsel %vm644, %v625, %v668
    %v670 = vsel %vm646, %v629, %v669
    %v671 = vsel %vm648, %v633, %v670
    %v672 = vsel %vm650, %v637, %v671
    %v677 = vcombine.high %v651, 0.0
    %v679 = vunpack.c.l.s4 1983009808
    %v680 = vunpack.c.0.s8 %v679
    %v681 = vlaneseq
    %v682 = vshrl.u32 %v681, 7
    %v683 = vsub.s32 %v680, %v682
    %v684 = vrot.slane %v651, %v683
    %v686 = vunpack.c.l.s4 1983009808
    %v687 = vunpack.c.0.s8 %v686
    %v688 = vlaneseq
    %v689 = vshrl.u32 %v688, 7
    %v690 = vsub.s32 %v687, %v689
    %v691 = vrot.slane %v677, %v690
    %v692 = vcombine.high %v684, 0.0
    %v694 = vunpack.c.l.s4 1934713408
    %v695 = vunpack.c.0.s8 %v694
    %v696 = vlaneseq
    %v697 = vshrl.u32 %v696, 7
    %v698 = vsub.s32 %v695, %v697
    %v699 = vrot.slane %v684, %v698
    %v701 = vunpack.c.l.s4 1934713408
    %v702 = vunpack.c.0.s8 %v701
    %v703 = vlaneseq
    %v704 = vshrl.u32 %v703, 7
    %v705 = vsub.s32 %v702, %v704
    %v706 = vrot.slane %v692, %v705
    %v707 = vcombine.high %v691, 0.0
    %v709 = vunpack.c.l.s4 1934713408
    %v710 = vunpack.c.0.s8 %v709
    %v711 = vlaneseq
    %v712 = vshrl.u32 %v711, 7
    %v713 = vsub.s32 %v710, %v712
    %v714 = vrot.slane %v691, %v713
    %v716 = vunpack.c.l.s4 1934713408
    %v717 = vunpack.c.0.s8 %v716
    %v718 = vlaneseq
    %v719 = vshrl.u32 %v718, 7
    %v720 = vsub.s32 %v717, %v719
    %v721 = vrot.slane %v707, %v720
    %v722 = vcombine.high %v699, 0.0
    %v723 = vcombine.high %v706, 0.0
    %v724 = vcombine.high %v714, 0.0
    %v725 = vcombine.high %v721, 0.0
    %v726 = vcombine.high %v658, 0.0
    %v728 = vunpack.c.l.s4 1983009808
    %v729 = vunpack.c.0.s8 %v728
    %v730 = vlaneseq
    %v731 = vshrl.u32 %v730, 7
    %v732 = vsub.s32 %v729, %v731
    %v733 = vrot.slane %v658, %v732
    %v735 = vunpack.c.l.s4 1983009808
    %v736 = vunpack.c.0.s8 %v735
    %v737 = vlaneseq
    %v738 = vshrl.u32 %v737, 7
    %v739 = vsub.s32 %v736, %v738
    %v740 = vrot.slane %v726, %v739
    %v741 = vcombine.high %v733, 0.0
    %v743 = vunpack.c.l.s4 1934713408
    %v744 = vunpack.c.0.s8 %v743
    %v745 = vlaneseq
    %v746 = vshrl.u32 %v745, 7
    %v747 = vsub.s32 %v744, %v746
    %v748 = vrot.slane %v733, %v747
    %v750 = vunpack.c.l.s4 1934713408
    %v751 = vunpack.c.0.s8 %v750
    %v752 = vlaneseq
    %v753 = vshrl.u32 %v752, 7
    %v754 = vsub.s32 %v751, %v753
    %v755 = vrot.slane %v741, %v754
    %v756 = vcombine.high %v740, 0.0
    %v758 = vunpack.c.l.s4 1934713408
    %v759 = vunpack.c.0.s8 %v758
    %v760 = vlaneseq
    %v761 = vshrl.u32 %v760, 7
    %v762 = vsub.s32 %v759, %v761
    %v763 = vrot.slane %v740, %v762
    %v765 = vunpack.c.l.s4 1934713408
    %v766 = vunpack.c.0.s8 %v765
    %v767 = vlaneseq
    %v768 = vshrl.u32 %v767, 7
    %v769 = vsub.s32 %v766, %v768
    %v770 = vrot.slane %v756, %v769
    %v771 = vcombine.high %v748, 0.0
    %v772 = vcombine.high %v755, 0.0
    %v773 = vcombine.high %v763, 0.0
    %v774 = vcombine.high %v770, 0.0
    %v775 = vcombine.high %v665, 0.0
    %v777 = vunpack.c.l.s4 1983009808
    %v778 = vunpack.c.0.s8 %v777
    %v779 = vlaneseq
    %v780 = vshrl.u32 %v779, 7
    %v781 = vsub.s32 %v778, %v780
    %v782 = vrot.slane %v665, %v781
    %v784 = vunpack.c.l.s4 1983009808
    %v785 = vunpack.c.0.s8 %v784
    %v786 = vlaneseq
    %v787 = vshrl.u32 %v786, 7
    %v788 = vsub.s32 %v785, %v787
    %v789 = vrot.slane %v775, %v788
    %v790 = vcombine.high %v782, 0.0
    %v792 = vunpack.c.l.s4 1934713408
    %v793 = vunpack.c.0.s8 %v792
    %v794 = vlaneseq
    %v795 = vshrl.u32 %v794, 7
    %v796 = vsub.s32 %v793, %v795
    %v797 = vrot.slane %v782, %v796
    %v799 = vunpack.c.l.s4 1934713408
    %v800 = vunpack.c.0.s8 %v799
    %v801 = vlaneseq
    %v802 = vshrl.u32 %v801, 7
    %v803 = vsub.s32 %v800, %v802
    %v804 = vrot.slane %v790, %v803
    %v805 = vcombine.high %v789, 0.0
    %v807 = vunpack.c.l.s4 1934713408
    %v808 = vunpack.c.0.s8 %v807
    %v809 = vlaneseq
    %v810 = vshrl.u32 %v809, 7
    %v811 = vsub.s32 %v808, %v810
    %v812 = vrot.slane %v789, %v811
    %v814 = vunpack.c.l.s4 1934713408
    %v815 = vunpack.c.0.s8 %v814
    %v816 = vlaneseq
    %v817 = vshrl.u32 %v816, 7
    %v818 = vsub.s32 %v815, %v817
    %v819 = vrot.slane %v805, %v818
    %v820 = vcombine.high %v797, 0.0
    %v821 = vcombine.high %v804, 0.0
    %v822 = vcombine.high %v812, 0.0
    %v823 = vcombine.high %v819, 0.0
    %v824 = vcombine.high %v672, 0.0
    %v826 = vunpack.c.l.s4 1983009808
    %v827 = vunpack.c.0.s8 %v826
    %v828 = vlaneseq
    %v829 = vshrl.u32 %v828, 7
    %v830 = vsub.s32 %v827, %v829
    %v831 = vrot.slane %v672, %v830
    %v833 = vunpack.c.l.s4 1983009808
    %v834 = vunpack.c.0.s8 %v833
    %v835 = vlaneseq
    %v836 = vshrl.u32 %v835, 7
    %v837 = vsub.s32 %v834, %v836
    %v838 = vrot.slane %v824, %v837
    %v839 = vcombine.high %v831, 0.0
    %v841 = vunpack.c.l.s4 1934713408
    %v842 = vunpack.c.0.s8 %v841
    %v843 = vlaneseq
    %v844 = vshrl.u32 %v843, 7
    %v845 = vsub.s32 %v842, %v844
    %v846 = vrot.slane %v831, %v845
    %v848 = vunpack.c.l.s4 1934713408
    %v849 = vunpack.c.0.s8 %v848
    %v850 = vlaneseq
    %v851 = vshrl.u32 %v850, 7
    %v852 = vsub.s32 %v849, %v851
    %v853 = vrot.slane %v839, %v852
    %v854 = vcombine.high %v838, 0.0
    %v856 = vunpack.c.l.s4 1934713408
    %v857 = vunpack.c.0.s8 %v856
    %v858 = vlaneseq
    %v859 = vshrl.u32 %v858, 7
    %v860 = vsub.s32 %v857, %v859
    %v861 = vrot.slane %v838, %v860
    %v863 = vunpack.c.l.s4 1934713408
    %v864 = vunpack.c.0.s8 %v863
    %v865 = vlaneseq
    %v866 = vshrl.u32 %v865, 7
    %v867 = vsub.s32 %v864, %v866
    %v868 = vrot.slane %v854, %v867
    %v869 = vcombine.high %v846, 0.0
    %v870 = vcombine.high %v853, 0.0
    %v871 = vcombine.high %v861, 0.0
    %v872 = vcombine.high %v868, 0.0
    %874 = vrot.lane.b32.xlu0 %v722, 4
    %v875 = vpop.permute.xlu0 %874
    %878 = vrot.lane.b32.xlu0 %v706, 8
    %v879 = vpop.permute.xlu0 %878
    %882 = vrot.lane.b32.xlu0 %v723, 12
    %v883 = vpop.permute.xlu0 %882
    %886 = vrot.lane.b32.xlu0 %v714, 16
    %v887 = vpop.permute.xlu0 %886
    %890 = vrot.lane.b32.xlu0 %v724, 20
    %v891 = vpop.permute.xlu0 %890
    %894 = vrot.lane.b32.xlu0 %v721, 24
    %v895 = vpop.permute.xlu0 %894
    %898 = vrot.lane.b32.xlu0 %v725, 28
    %v899 = vpop.permute.xlu0 %898
    %902 = vrot.lane.b32.xlu0 %v748, 32
    %v903 = vpop.permute.xlu0 %902
    %906 = vrot.lane.b32.xlu0 %v771, 36
    %v907 = vpop.permute.xlu0 %906
    %910 = vrot.lane.b32.xlu0 %v755, 40
    %v911 = vpop.permute.xlu0 %910
    %914 = vrot.lane.b32.xlu0 %v772, 44
    %v915 = vpop.permute.xlu0 %914
    %918 = vrot.lane.b32.xlu0 %v763, 48
    %v919 = vpop.permute.xlu0 %918
    %922 = vrot.lane.b32.xlu0 %v773, 52
    %v923 = vpop.permute.xlu0 %922
    %926 = vrot.lane.b32.xlu0 %v770, 56
    %v927 = vpop.permute.xlu0 %926
    %930 = vrot.lane.b32.xlu0 %v774, 60
    %v931 = vpop.permute.xlu0 %930
    %934 = vrot.lane.b32.xlu0 %v797, 64
    %v935 = vpop.permute.xlu0 %934
    %938 = vrot.lane.b32.xlu0 %v820, 68
    %v939 = vpop.permute.xlu0 %938
    %942 = vrot.lane.b32.xlu0 %v804, 72
    %v943 = vpop.permute.xlu0 %942
    %946 = vrot.lane.b32.xlu0 %v821, 76
    %v947 = vpop.permute.xlu0 %946
    %950 = vrot.lane.b32.xlu0 %v812, 80
    %v951 = vpop.permute.xlu0 %950
    %954 = vrot.lane.b32.xlu0 %v822, 84
    %v955 = vpop.permute.xlu0 %954
    %958 = vrot.lane.b32.xlu0 %v819, 88
    %v959 = vpop.permute.xlu0 %958
    %962 = vrot.lane.b32.xlu0 %v823, 92
    %v963 = vpop.permute.xlu0 %962
    %966 = vrot.lane.b32.xlu0 %v846, 96
    %v967 = vpop.permute.xlu0 %966
    %970 = vrot.lane.b32.xlu0 %v869, 100
    %v971 = vpop.permute.xlu0 %970
    %974 = vrot.lane.b32.xlu0 %v853, 104
    %v975 = vpop.permute.xlu0 %974
    %978 = vrot.lane.b32.xlu0 %v870, 108
    %v979 = vpop.permute.xlu0 %978
    %982 = vrot.lane.b32.xlu0 %v861, 112
    %v983 = vpop.permute.xlu0 %982
    %986 = vrot.lane.b32.xlu0 %v871, 116
    %v987 = vpop.permute.xlu0 %986
    %990 = vrot.lane.b32.xlu0 %v868, 120
    %v991 = vpop.permute.xlu0 %990
    %994 = vrot.lane.b32.xlu0 %v872, 124
    %v995 = vpop.permute.xlu0 %994
    %vm997 = vcmask 31744
    %v998 = vsel %vm997, %v699, %v875
    %vm999 = vcmask 64512
    %v1000 = vsel %vm999, %v998, %v879
    %vm1001 = vcmask 97280
    %v1002 = vsel %vm1001, %v1000, %v883
    %vm1003 = vcmask 130048
    %v1004 = vsel %vm1003, %v1002, %v887
    %vm1005 = vcmask 162816
    %v1006 = vsel %vm1005, %v1004, %v891
    %vm1007 = vcmask 195584
    %v1008 = vsel %vm1007, %v1006, %v895
    %vm1009 = vcmask 228352
    %v1010 = vsel %vm1009, %v1008, %v899
    %vm1011 = vcmask 261120
    %v1012 = vsel %vm1011, %v1010, %v903
    %vm1013 = vcmask 293888
    %v1014 = vsel %vm1013, %v1012, %v907
    %vm1015 = vcmask 326656
    %v1016 = vsel %vm1015, %v1014, %v911
    %vm1017 = vcmask 359424
    %v1018 = vsel %vm1017, %v1016, %v915
    %vm1019 = vcmask 392192
    %v1020 = vsel %vm1019, %v1018, %v919
    %vm1021 = vcmask 424960
    %v1022 = vsel %vm1021, %v1020, %v923
    %vm1023 = vcmask 457728
    %v1024 = vsel %vm1023, %v1022, %v927
    %vm1025 = vcmask 490496
    %v1026 = vsel %vm1025, %v1024, %v931
    %vm1027 = vcmask 523264
    %v1028 = vsel %vm1027, %v1026, %v935
    %vm1029 = vcmask 556032
    %v1030 = vsel %vm1029, %v1028, %v939
    %vm1031 = vcmask 588800
    %v1032 = vsel %vm1031, %v1030, %v943
    %vm1033 = vcmask 621568
    %v1034 = vsel %vm1033, %v1032, %v947
    %vm1035 = vcmask 654336
    %v1036 = vsel %vm1035, %v1034, %v951
    %vm1037 = vcmask 687104
    %v1038 = vsel %vm1037, %v1036, %v955
    %vm1039 = vcmask 719872
    %v1040 = vsel %vm1039, %v1038, %v959
    %vm1041 = vcmask 752640
    %v1042 = vsel %vm1041, %v1040, %v963
    %vm1043 = vcmask 785408
    %v1044 = vsel %vm1043, %v1042, %v967
    %vm1045 = vcmask 818176
    %v1046 = vsel %vm1045, %v1044, %v971
    %vm1047 = vcmask 850944
    %v1048 = vsel %vm1047, %v1046, %v975
    %vm1049 = vcmask 883712
    %v1050 = vsel %vm1049, %v1048, %v979
    %vm1051 = vcmask 916480
    %v1052 = vsel %vm1051, %v1050, %v983
    %vm1053 = vcmask 949248
    %v1054 = vsel %vm1053, %v1052, %v987
    %vm1055 = vcmask 982016
    %v1056 = vsel %vm1055, %v1054, %v991
    %vm1057 = vcmask 1014784
    %v1058 = vsel %vm1057, %v1056, %v995
    %1059 = vst [vmem:[#allocation5] sm:$0x1] %v1058
    // Predicated region
    $region10: #{tpu_custom_call.1} parent=1 // pred_check
      _
    $region11: #{tpu_custom_call.1} parent=1 // pred_check_branch
      %1061 = sbr.rel (0) target = $region13
    $region12: #{tpu_custom_call.1} parent=1 // pred_region
      %s1063 = ssub.s32 16, 16
      %1064 = vsyncadd [#allocation4], %s1063
      %s1066 = sshll.u32 [#allocation5], 4
      %s1067 = int_to_ptr.vmem [resolvable:$true] %s1066
      %1069 = dma.vmem_to_hbm [thread:$0]  %s1067, 16, %s1, [#allocation4]
    $region13: #{tpu_custom_call.1} parent=1 // pred_fallthru
      _
    // Predicated region
    $region14: #{tpu_custom_call.1} parent=1 // pred_check
      _
    $region15: #{tpu_custom_call.1} parent=1 // pred_check_branch
      %1071 = sbr.rel (0) target = $region17
    $region16: #{tpu_custom_call.1} parent=1 // pred_region
      %1072 = dma.done [#allocation4], 16
    $region17: #{tpu_custom_call.1} parent=1 // pred_fallthru
      _
    %1073 = vsyncpa [#allocation3], 1
    %1074 = vsyncpa [#allocation4], 1

</llo_original>
